<compile_context>
chip_gen: v6e
topology: v6e:2x2x1
jax: 0.10.0
libtpu: 0.0.40
codegen_flags: <defaults>
</compile_context>

<pallas_src>
import functools

import jax
import jax.numpy as jnp
from jax.experimental import pallas as pl
from jax.experimental.pallas import tpu as pltpu


def _round_up(x, m):
    return ((x + m - 1) // m) * m


def _focal_loss_kernel(score_ref, target_ref, part_ref, *, gamma, eps, total_b, tile_b):
    # score_ref : [TILE_B, C]  (input dtype; upcast here)
    # target_ref: [TILE_B, 1]  int32 class indices
    # part_ref  : [1, 1, 1]    float32 partial sum for this tile
    pid = pl.program_id(0)

    x = score_ref[...].astype(jnp.float32)                      # [TB, C]
    tb, c = x.shape

    # Row-wise log-softmax pieces (never materialize the full softmax).
    m = jnp.max(x, axis=-1, keepdims=True)                      # [TB, 1]
    e = jnp.exp(x - m)                                          # [TB, C] (EUP)
    denom = jnp.sum(e, axis=-1, keepdims=True)                  # [TB, 1]

    # Gather the target-class logit via one-hot compare against a lane iota
    # (TPU-friendly gather; avoids dynamic lane indexing).
    col = jax.lax.broadcasted_iota(jnp.int32, (tb, c), 1)       # [TB, C]
    tgt = target_ref[...]                                       # [TB, 1]
    onehot = (col == tgt).astype(jnp.float32)                   # [TB, C]
    x_t = jnp.sum(x * onehot, axis=-1, keepdims=True)           # [TB, 1]

    # log_pt / pt from per-row quantities only.
    log_pt = (x_t - m) - jnp.log(denom)                         # [TB, 1]
    pt = jnp.exp(log_pt)                                        # [TB, 1]
    pt = jnp.clip(pt, eps, 1.0 - eps)

    # (1 - pt) ** gamma == exp(gamma * log1p(-pt)); stays on [TB, 1].
    loss = -jnp.log(pt) * jnp.exp(gamma * jnp.log1p(-pt))       # [TB, 1]

    # Mask rows of the final (possibly partial) tile that fall beyond B.
    row = jax.lax.broadcasted_iota(jnp.int32, (tb, 1), 0) + pid * tile_b
    loss = jnp.where(row < total_b, loss, 0.0)

    part_ref[...] = jnp.reshape(jnp.sum(loss), (1, 1, 1))


def focal_loss(label_score, target, gamma=0.2, eps=1e-7, tile_b=None):
    """label_score: [B, C] float (f32/bf16); target: [B] int class indices.

    Returns the scalar mean focal loss (float32).
    """
    B, C = label_score.shape
    target_2d = target.reshape(B, 1).astype(jnp.int32)
    itemsize = jnp.dtype(label_score.dtype).itemsize

    if tile_b is None:
        # Keep each score block <= ~4 MiB so that 2x double-buffered inputs sit
        # well inside scoped VMEM on every generation (incl. v7x's 64 MiB).
        budget_bytes = 4 * 1024 * 1024
        rows_fit = max(8, (budget_bytes // max(1, C * itemsize)) // 8 * 8)
        tile_b = int(min(_round_up(B, 8), rows_fit, 1024))
    tile_b = max(8, _round_up(int(tile_b), 8))

    num_tiles = pl.cdiv(B, tile_b)

    kernel = functools.partial(
        _focal_loss_kernel,
        gamma=float(gamma),
        eps=float(eps),
        total_b=B,
        tile_b=tile_b,
    )

    cost = pl.CostEstimate(
        flops=8 * B * C,
        transcendentals=B * C + 4 * B,        # exp per element + per-row exp/log/log1p
        bytes_accessed=B * C * itemsize + B * 4 + num_tiles * 4,
    )

    partials = pl.pallas_call(
        kernel,
        out_shape=jax.ShapeDtypeStruct((num_tiles, 1, 1), jnp.float32),
        grid=(num_tiles,),
        in_specs=[
            pl.BlockSpec((tile_b, C), lambda i: (i, 0)),
            pl.BlockSpec((tile_b, 1), lambda i: (i, 0)),
        ],
        out_specs=pl.BlockSpec((1, 1, 1), lambda i: (i, 0, 0)),
        compiler_params=pltpu.CompilerParams(
            dimension_semantics=("parallel",),   # independent batch tiles -> megacore
        ),
        cost_estimate=cost,
    )(label_score, target_2d)

    # Final reduction over per-tile partials; divide by the true batch size.
    return jnp.sum(partials) / B


def _focal_loss_ref(label_score, target, gamma=0.2, eps=1e-7):
    # Pure-JAX reference for correctness checking.
    p = jax.nn.softmax(label_score.astype(jnp.float32), axis=-1)
    pt = jnp.take_along_axis(p, target.reshape(-1, 1).astype(jnp.int32), axis=1)
    pt = jnp.clip(pt, eps, 1.0 - eps)
    loss = -jnp.log(pt) * jnp.power(1.0 - pt, gamma)
    return jnp.mean(loss)


if __name__ == "__main__":
    key = jax.random.PRNGKey(0)
    k_score, k_tgt, k_s2, k_t2 = jax.random.split(key, 4)

    # Case 1: small f32 inputs (single tile).
    B, C = 8, 16
    label_score = jax.random.normal(k_score, (B, C), dtype=jnp.float32)
    target = jax.random.randint(k_tgt, (B,), 0, C, dtype=jnp.int32)

    out = jax.block_until_ready(focal_loss(label_score, target))
    ref = _focal_loss_ref(label_score, target)
    assert jnp.allclose(out, ref, rtol=1e-5, atol=1e-6), (out, ref)

    # Case 2: ragged batch (exercises padded-row masking across 2 tiles) and a
    # bf16 input streamed straight through (no wrapper cast).
    B2, C2 = 11, 24
    score2 = jax.random.normal(k_s2, (B2, C2), dtype=jnp.float32).astype(jnp.bfloat16)
    target2 = jax.random.randint(k_t2, (B2,), 0, C2, dtype=jnp.int32)

    out2 = jax.block_until_ready(focal_loss(score2, target2, tile_b=8))
    ref2 = _focal_loss_ref(score2, target2)
    assert jnp.allclose(out2, ref2, rtol=1e-4, atol=1e-5), (out2, ref2)

    print("KERNEL_OK")
</pallas_src>

<mosaic_0001>
module attributes {stable_mosaic.version = 11 : i64} {
  func.func @_focal_loss_kernel(%arg0: i32, %arg1: memref<8x16xf32, #tpu.memory_space<vmem>>, %arg2: memref<8x1xi32, #tpu.memory_space<vmem>>, %arg3: memref<1x1x1xf32, #tpu.memory_space<vmem>>) attributes {dimension_semantics = [#tpu.dimension_semantics<parallel>], iteration_bounds = array<i64: 1>, scalar_prefetch = 0 : i64, scratch_operands = 0 : i64, tpu.core_type = #tpu.core_type<tc>, window_params = [{transform_indices = @transform_0, window_bounds = array<i64: 8, 16>}, {transform_indices = @transform_1, window_bounds = array<i64: 8, 1>}, {transform_indices = @transform_2, window_bounds = array<i64: 1, 1, 1>}]} {
    %c0 = arith.constant 0 : index
    %c0_0 = arith.constant 0 : index
    %0 = vector.load %arg1[%c0, %c0_0] : memref<8x16xf32, #tpu.memory_space<vmem>>, vector<8x16xf32>
    %cst = arith.constant dense<0xFF800000> : vector<8xf32>
    %1 = vector.multi_reduction <maximumf>, %0, %cst [1] : vector<8x16xf32> to vector<8xf32>
    %2 = vector.shape_cast %1 : vector<8xf32> to vector<8x1xf32>
    %3 = vector.broadcast %2 : vector<8x1xf32> to vector<8x16xf32>
    %4 = arith.subf %0, %3 : vector<8x16xf32>
    %5 = math.exp %4 : vector<8x16xf32>
    %cst_1 = arith.constant dense<0.000000e+00> : vector<8xf32>
    %6 = vector.multi_reduction <add>, %5, %cst_1 [1] : vector<8x16xf32> to vector<8xf32>
    %7 = vector.shape_cast %6 : vector<8xf32> to vector<8x1xf32>
    %8 = tpu.iota {dimensions = array<i32: 1>} : vector<8x16xi32>
    %c0_2 = arith.constant 0 : index
    %c0_3 = arith.constant 0 : index
    %9 = vector.load %arg2[%c0_2, %c0_3] : memref<8x1xi32, #tpu.memory_space<vmem>>, vector<8x1xi32>
    %10 = vector.broadcast %9 : vector<8x1xi32> to vector<8x16xi32>
    %11 = arith.cmpi eq, %8, %10 : vector<8x16xi32>
    %12 = arith.extui %11 : vector<8x16xi1> to vector<8x16xi32>
    %13 = arith.sitofp %12 : vector<8x16xi32> to vector<8x16xf32>
    %14 = arith.mulf %0, %13 : vector<8x16xf32>
    %cst_4 = arith.constant dense<0.000000e+00> : vector<8xf32>
    %15 = vector.multi_reduction <add>, %14, %cst_4 [1] : vector<8x16xf32> to vector<8xf32>
    %16 = vector.shape_cast %15 : vector<8xf32> to vector<8x1xf32>
    %17 = arith.subf %16, %2 : vector<8x1xf32>
    %18 = math.log %7 : vector<8x1xf32>
    %19 = arith.subf %17, %18 : vector<8x1xf32>
    %20 = math.exp %19 : vector<8x1xf32>
    %cst_5 = arith.constant 1.000000e-07 : f32
    %cst_6 = arith.constant 0.99999988 : f32
    %21 = vector.broadcast %cst_5 : f32 to vector<8x1xf32>
    %22 = arith.maximumf %21, %20 : vector<8x1xf32>
    %23 = vector.broadcast %cst_6 : f32 to vector<8x1xf32>
    %24 = arith.minimumf %23, %22 : vector<8x1xf32>
    %25 = math.log %24 : vector<8x1xf32>
    %cst_7 = arith.constant 0.000000e+00 : f32
    %26 = vector.broadcast %cst_7 : f32 to vector<8x1xf32>
    %27 = arith.subf %26, %25 : vector<8x1xf32>
    %cst_8 = arith.constant 0.000000e+00 : f32
    %28 = vector.broadcast %cst_8 : f32 to vector<8x1xf32>
    %29 = arith.subf %28, %24 : vector<8x1xf32>
    %30 = math.log1p %29 : vector<8x1xf32>
    %cst_9 = arith.constant 2.000000e-01 : f32
    %31 = vector.broadcast %cst_9 : f32 to vector<8x1xf32>
    %32 = arith.mulf %31, %30 : vector<8x1xf32>
    %33 = math.exp %32 : vector<8x1xf32>
    %34 = arith.mulf %27, %33 : vector<8x1xf32>
    %35 = tpu.iota {dimensions = array<i32: 0>} : vector<8x1xi32>
    %c8_i32 = arith.constant 8 : i32
    %36 = arith.muli %arg0, %c8_i32 : i32
    %37 = vector.broadcast %36 : i32 to vector<8x1xi32>
    %38 = arith.addi %35, %37 : vector<8x1xi32>
    %c8_i32_10 = arith.constant 8 : i32
    %39 = vector.broadcast %c8_i32_10 : i32 to vector<8x1xi32>
    %40 = arith.cmpi slt, %38, %39 : vector<8x1xi32>
    %cst_11 = arith.constant 0.000000e+00 : f32
    %41 = vector.broadcast %cst_11 : f32 to vector<8x1xf32>
    %42 = arith.select %40, %34, %41 : vector<8x1xi1>, vector<8x1xf32>
    %43 = vector.shape_cast %42 : vector<8x1xf32> to vector<1x8x1xf32>
    %cst_12 = arith.constant dense<0.000000e+00> : vector<1xf32>
    %44 = vector.multi_reduction <add>, %43, %cst_12 [1, 2] : vector<1x8x1xf32> to vector<1xf32>
    %45 = vector.shape_cast %44 : vector<1xf32> to vector<1x1x1xf32>
    %46 = vector.extract %45[0, 0, 0] : f32 from vector<1x1x1xf32>
    %47 = vector.broadcast %46 : f32 to vector<1x1x1xf32>
    %c0_13 = arith.constant 0 : index
    %c0_14 = arith.constant 0 : index
    %c0_15 = arith.constant 0 : index
    %48 = vector.load %arg3[%c0_13, %c0_14, %c0_15] : memref<1x1x1xf32, #tpu.memory_space<vmem>>, vector<1x1x1xf32>
    tpu.vector_store %arg3[%c0_13, %c0_14, %c0_15], %47 {strides = array<i32>} : memref<1x1x1xf32, #tpu.memory_space<vmem>>, vector<1x1x1xf32>,
    return
  }
  func.func @transform_0(%arg0: i32) -> (i32, i32) {
    %c0_i32 = arith.constant 0 : i32
    %c0_i32_0 = arith.constant 0 : i32
    return %arg0, %c0_i32 : i32, i32
  }
  func.func @transform_1(%arg0: i32) -> (i32, i32) {
    %c0_i32 = arith.constant 0 : i32
    %c0_i32_0 = arith.constant 0 : i32
    return %arg0, %c0_i32 : i32, i32
  }
  func.func @transform_2(%arg0: i32) -> (i32, i32, i32) {
    %c0_i32 = arith.constant 0 : i32
    %c0_i32_0 = arith.constant 0 : i32
    %c0_i32_1 = arith.constant 0 : i32
    return %arg0, %c0_i32, %c0_i32_0 : i32, i32, i32
  }
}

</mosaic_0001>

<llo_original>
// kernel: tpu_custom_call.1
$region0: #{tpu_custom_call.1}
  #allocation0 [shape = 'u32[]', space=smem, size = 0x4, offset = 0x4, fixed_abs, tag = 'smem constant byte address 0x4 - core index']
  #allocation1 [shape = 'u32[144,128]{1,0:T(1,128)}', space=vmem, size = 0x12000, scoped, tag = 'internal scratch']
  %s0 = inlined_call_operand.vmem [shape: f32[8,16], index: 0, kind: input, shape index: {}]
  %s1 = inlined_call_operand.vmem [shape: s32[8,1], index: 1, kind: input, shape index: {}]
  %s2 = inlined_call_operand.hbm [shape: f32[1,1,1], index: 2, kind: output, shape index: {}]
  %s3 = sld [smem:[#allocation0]]
  $region18: #{tpu_custom_call.1} parent=0
    _
  %s5 = ssub.s32 1, %s3
  %s6 = scalar_select 0, %s5, %s3
  $region1: #{tpu_custom_call.1} parent=0
    #allocation2 [shape = 'u8[512]{0}', space=vmem, size = 0x400, scoped, tag = 'output window, operand 0, single buffered']
    #allocation3 [shape = 's32[1]{0}', space=sflag, size = 0x4, scoped, tag = 'scoped memory for tpu_custom_call.1']
    %7 = vsyncpa [#allocation3], 0
    // Predicated region
    $region2: #{tpu_custom_call.1} parent=1 // pred_check
      _
    $region3: #{tpu_custom_call.1} parent=1 // pred_check_branch
      %9 = sbr.rel (0) target = $region5
    $region4: #{tpu_custom_call.1} parent=1 // pred_region
      _
    $region5: #{tpu_custom_call.1} parent=1 // pred_fallthru
      _
    // Predicated region
    $region6: #{tpu_custom_call.1} parent=1 // pred_check
      _
    $region7: #{tpu_custom_call.1} parent=1 // pred_check_branch
      %11 = sbr.rel (0) target = $region9
    $region8: #{tpu_custom_call.1} parent=1 // pred_region
      _
    $region9: #{tpu_custom_call.1} parent=1 // pred_fallthru
      _
    %v12 = vld [vmem:[%s0] sm:$0xff]
    %vm13 = vcmask 130048
    %v14 = vsel %vm13, %v12, -inf
    %15 = vmax.xlane.f32.xlu0 %v14
    %v16 = vpop.xlane.xlu0 %15
    %v17 = vsub.f32 %v12, %v16
    %v18 = vmul.f32 %v17, 1.442695
    %v19 = vpow.pop %v18
    %v20 = vsel %vm13, %v19, 0.0
    %21 = vadd.xlane.f32.xlu0 %v20
    %v22 = vpop.xlane.xlu0 %21
    %v23 = vlaneseq
    %v24 = vand.u32 %v23, 127
    %v25 = vld [vmem:[%s1] sm:$0xff]
    %26 = vset.pattern.permute.xlu0 0
    %27 = vperm.xlu0 %26, %v25
    %v28 = vpop.permute.xlu0 %27
    %vm29 = vcmp.eq.s32.totalorder %v24, %v28
    %v30 = vsel %vm29, 1, 0
    %v31 = vcvt.s32.f32 %v30
    %v32 = vmul.f32 %v12, %v31
    %v33 = vsel %vm13, %v32, 0.0
    %34 = vadd.xlane.f32.xlu0 %v33
    %v35 = vpop.xlane.xlu0 %34
    %v36 = vsub.f32 %v35, %v16
    %v37 = vlog2.pop %v22
    %v38 = vmul.f32 %v37, 0.6931472
    %v39 = vsub.f32 %v36, %v38
    %v40 = vmul.f32 %v39, 1.442695
    %v41 = vpow.pop %v40
    %v42 = vmax.f32 %v41, 1e-07
    %v43 = vmin.f32 %v42, 0.9999999
    %v44 = vlog2.pop %v43
    %v45 = vmul.f32 %v44, 0.6931472
    %v46 = vsub.f32 0.0, %v45
    %v47 = vsub.f32 0.0, %v43
    %v48 = vadd.f32 %v47, 1.0
    %v49 = vlog2.pop %v48
    %v50 = vmul.f32 %v49, 0.6931472
    %v51 = vmul.f32 -0.5, %v47
    %v52 = vadd.f32 %v51, 1.0
    %v53 = vmul.f32 %v52, %v47
    %v54 = vand.u32 2147483647, %v47
    %vm55 = vcmp.lt.f32.partialorder %v54, 0.0004427343
    %v56 = vsel %vm55, %v53, %v50
    %v57 = vmul.f32 %v56, 0.2
    %v58 = vmul.f32 %v57, 1.442695
    %v59 = vpow.pop %v58
    %v60 = vmul.f32 %v46, %v59
    %v61 = vlaneseq
    %v62 = vshrl.u32 %v61, 7
    %s63 = smul.u32 0, 8
    %v64 = vstv %s63
    %v65 = vadd.s32 %v62, %v64
    %vm66 = vcmp.lt.s32.totalorder %v65, 8
    %v67 = vsel %vm66, %v60, 0.0
    %vm68 = vcmask 7168
    %v69 = vsel %vm68, %v67, 0.0
    %70 = vadd.xlane.f32.xlu0 %v69
    %v71 = vpop.xlane.xlu0 %70
    %v72 = vrot.slane %v71, 4
    %v73 = vadd.f32 %v71, %v72
    %v74 = vrot.slane %v73, 2
    %v75 = vadd.f32 %v73, %v74
    %v76 = vrot.slane %v75, 1
    %v77 = vadd.f32 %v75, %v76
    %s78 = vtos %v77
    %v79 = vstv %s78
    %vm80 = vcmask 0
    %81 = vst.msk [vmem:[#allocation2] sm:$0x1] %vm80, %v79
    // Predicated region
    $region10: #{tpu_custom_call.1} parent=1 // pred_check
      _
    $region11: #{tpu_custom_call.1} parent=1 // pred_check_branch
      %83 = sbr.rel (0) target = $region13
    $region12: #{tpu_custom_call.1} parent=1 // pred_region
      %s85 = ssub.s32 16, 16
      %86 = vsyncadd [#allocation3], %s85
      %s88 = sshll.u32 [#allocation2], 4
      %s89 = int_to_ptr.vmem [resolvable:$true] %s88
      %91 = dma.vmem_to_hbm [thread:$0]  %s89, 16, %s2, [#allocation3]
    $region13: #{tpu_custom_call.1} parent=1 // pred_fallthru
      _
    // Predicated region
    $region14: #{tpu_custom_call.1} parent=1 // pred_check
      _
    $region15: #{tpu_custom_call.1} parent=1 // pred_check_branch
      %93 = sbr.rel (0) target = $region17
    $region16: #{tpu_custom_call.1} parent=1 // pred_region
      %94 = dma.done [#allocation3], 16
    $region17: #{tpu_custom_call.1} parent=1 // pred_fallthru
      _
    %95 = vsyncpa [#allocation3], 1

</llo_original>
